<compile_context>
chip_gen: v5e
topology: v5e:2x2
jax: 0.10.0
libtpu: 0.0.40
codegen_flags: <defaults>
</compile_context>

<pallas_src>
import jax
import jax.numpy as jnp
from jax.experimental import pallas as pl
from jax.experimental.pallas import tpu as pltpu


def _round_up(n, m):
    return ((n + m - 1) // m) * m


def _cdiv(a, b):
    return -(-a // b)


# -----------------------------------------------------------------------------
# Kernel body: one batch tile.  Both matmuls accumulate in f32 on the MXU; the
# hidden activation never touches VMEM/HBM.
# -----------------------------------------------------------------------------
def _encoder_kernel(x_ref, w1_ref, b1_ref, w2_ref, b2_ref, o_ref):
    h = jnp.dot(x_ref[...], w1_ref[...], preferred_element_type=jnp.float32)
    h = jnp.maximum(h + b1_ref[...], 0.0)                       # Linear + ReLU
    z = jnp.dot(h.astype(w2_ref.dtype), w2_ref[...],
                preferred_element_type=jnp.float32)
    o_ref[...] = jnp.tanh(z + b2_ref[...]).astype(o_ref.dtype)  # Linear + Tanh


# -----------------------------------------------------------------------------
# One-time parameter preprocessing (call at init, NOT per forward call).
# -----------------------------------------------------------------------------
def prepare_encoder_params(w1, b1, w2, b2, *, compute_dtype=jnp.float32,
                           out_dtype=None, pad_latent=None):
    """Pads/casts the parameters once:
       - hidden dim H -> multiple of 128 (exact: relu(0+0)=0, zero w2 rows
         contribute nothing) so h is lane-dense,
       - latent dim L -> multiple of 128 only when inflation <= ~2x,
       - matmul operands cast to `compute_dtype` (biases stay f32)."""
    D_in, H = w1.shape
    Hh, L = w2.shape
    assert Hh == H and b1.shape == (1, H) and b2.shape == (1, L)

    if out_dtype is None:
        out_dtype = compute_dtype
    if pad_latent is None:
        pad_latent = (L % 128 == 0) or (L >= 64)   # keep writeback inflation small

    Hp = _round_up(H, 128)
    if Hp != H:
        w1 = jnp.pad(w1, ((0, 0), (0, Hp - H)))
        b1 = jnp.pad(b1, ((0, 0), (0, Hp - H)))
        w2 = jnp.pad(w2, ((0, Hp - H), (0, 0)))

    Lp = _round_up(L, 128) if pad_latent else L
    if Lp != L:
        w2 = jnp.pad(w2, ((0, 0), (0, Lp - L)))
        b2 = jnp.pad(b2, ((0, 0), (0, Lp - L)))

    return dict(
        w1=w1.astype(compute_dtype),
        b1=b1.astype(jnp.float32),
        w2=w2.astype(compute_dtype),
        b2=b2.astype(jnp.float32),
        input_dim=D_in, hidden_pad=Hp, latent_dim=L, latent_pad=Lp,
        compute_dtype=jnp.dtype(compute_dtype), out_dtype=jnp.dtype(out_dtype),
    )


def _choose_tile_rows(B, bytes_per_row, weight_bytes, tb_max):
    """Largest sublane-aligned batch tile that fits a conservative ~12 MiB VMEM
    budget (v5e 16 MiB scoped default / v7x 64 MiB physical) and leaves >=2
    (>=4 for large B) grid steps for DMA pipelining and v7x's two TCs."""
    if B <= 8:
        return B
    budget = 12 << 20
    avail = budget - 2 * weight_bytes            # worst case: weights dbl-buffered
    rows = avail // bytes_per_row if avail > 0 else 8
    tb = min(tb_max, rows, B)
    if B >= 512:
        min_steps = 4 if B >= 2048 else 2
        tb = min(tb, _cdiv(B, min_steps))
    return max(8, (int(tb) // 8) * 8)


def encoder_forward(x, params, *, tb_max=2048):
    """Encoder forward pass.  x: (B, input_dim); params from
    prepare_encoder_params()."""
    w1, b1, w2, b2 = params["w1"], params["b1"], params["w2"], params["b2"]
    B, D_in = x.shape
    assert D_in == params["input_dim"]
    Hp, L, Lp = params["hidden_pad"], params["latent_dim"], params["latent_pad"]
    compute_dtype, out_dtype = params["compute_dtype"], params["out_dtype"]

    if x.dtype != compute_dtype:
        x = x.astype(compute_dtype)

    x_isz = compute_dtype.itemsize
    o_isz = out_dtype.itemsize
    weight_bytes = (w1.size * w1.dtype.itemsize + b1.size * b1.dtype.itemsize +
                    w2.size * w2.dtype.itemsize + b2.size * b2.dtype.itemsize)

    per_row = 2 * D_in * x_isz + 2 * Lp * o_isz        # double-buffered x + out
    TB = _choose_tile_rows(B, per_row, weight_bytes, tb_max)
    grid = (_cdiv(B, TB),)                             # ragged final block is OK

    footprint = TB * per_row + 2 * weight_bytes
    vmem_limit = int(min(max(int(footprint * 1.5) + (2 << 20), 16 << 20), 48 << 20))

    cost = pl.CostEstimate(
        flops=2 * B * (D_in * Hp + Hp * Lp),
        transcendentals=B * Lp,
        bytes_accessed=B * D_in * x_isz + weight_bytes + B * Lp * o_isz,
    )

    def build(single_buffer_weights):
        res = ({"pipeline_mode": pl.Buffered(1)} if single_buffer_weights else {})
        in_specs = [
            pl.BlockSpec((TB, D_in), lambda i: (i, 0)),              # x: batch-tiled
            pl.BlockSpec((D_in, Hp), lambda i: (0, 0), **res),       # w1 resident
            pl.BlockSpec((1, Hp), lambda i: (0, 0), **res),          # b1 resident
            pl.BlockSpec((Hp, Lp), lambda i: (0, 0), **res),         # w2 resident
            pl.BlockSpec((1, Lp), lambda i: (0, 0), **res),          # b2 resident
        ]
        return pl.pallas_call(
            _encoder_kernel,
            out_shape=jax.ShapeDtypeStruct((B, Lp), out_dtype),
            grid=grid,
            in_specs=in_specs,
            out_specs=pl.BlockSpec((TB, Lp), lambda i: (i, 0)),
            compiler_params=pltpu.CompilerParams(
                dimension_semantics=("parallel",),       # v7x: shard batch grid
                vmem_limit_bytes=vmem_limit,
            ),
            cost_estimate=cost,
        )

    try:
        # Invariant operands (constant index_map) only need one VMEM buffer.
        out = build(single_buffer_weights=True)(x, w1, b1, w2, b2)
    except Exception:
        # Fallback if this Pallas build rejects pipeline_mode=pl.Buffered(1).
        out = build(single_buffer_weights=False)(x, w1, b1, w2, b2)

    return out if Lp == L else out[:, :L]


# -----------------------------------------------------------------------------
# Init + reference + self-test
# -----------------------------------------------------------------------------
def init_encoder_params(key, input_dim, hidden_dim, latent_dim):
    """PyTorch-style nn.Linear init (uniform +-1/sqrt(fan_in)); weights stored
    pre-transposed as (in_features, out_features)."""
    k1, k2, k3, k4 = jax.random.split(key, 4)
    lim1 = 1.0 / jnp.sqrt(input_dim)
    lim2 = 1.0 / jnp.sqrt(hidden_dim)
    w1 = jax.random.uniform(k1, (input_dim, hidden_dim), jnp.float32, -lim1, lim1)
    b1 = jax.random.uniform(k2, (1, hidden_dim), jnp.float32, -lim1, lim1)
    w2 = jax.random.uniform(k3, (hidden_dim, latent_dim), jnp.float32, -lim2, lim2)
    b2 = jax.random.uniform(k4, (1, latent_dim), jnp.float32, -lim2, lim2)
    return w1, b1, w2, b2


def _reference(x, w1, b1, w2, b2):
    return jnp.tanh(jnp.maximum(x @ w1 + b1, 0.0) @ w2 + b2)


if __name__ == "__main__":
    # Small shapes consistent with the module: batch=8, input_dim=16,
    # hidden_dim=32, latent_dim=10.
    B, D_IN, H, L = 8, 16, 32, 10

    key = jax.random.PRNGKey(0)
    kx, kp, kx2 = jax.random.split(key, 3)
    x = jax.random.normal(kx, (B, D_IN), dtype=jnp.float32)
    w1, b1, w2, b2 = init_encoder_params(kp, D_IN, H, L)
    ref = _reference(x, w1, b1, w2, b2)

    # f32 path (bit-tight); small L=10 -> latent stays un-padded (masked
    # stores beat a 12.8x padded writeback + tanh).
    params_f32 = prepare_encoder_params(w1, b1, w2, b2, compute_dtype=jnp.float32)
    out = jax.block_until_ready(encoder_forward(x, params_f32))
    assert out.shape == (B, L)
    assert jnp.allclose(out, ref, atol=1e-5, rtol=1e-5)

    # Ragged batch: exercises grid = cdiv(B, TB) with a partial final block.
    B2 = 30
    x2 = jax.random.normal(kx2, (B2, D_IN), dtype=jnp.float32)
    out2 = jax.block_until_ready(encoder_forward(x2, params_f32))
    assert out2.shape == (B2, L)
    assert jnp.allclose(out2, _reference(x2, w1, b1, w2, b2), atol=1e-5, rtol=1e-5)

    # Lane-dense (padded-latent) output path.
    params_pad = prepare_encoder_params(w1, b1, w2, b2, compute_dtype=jnp.float32,
                                        pad_latent=True)
    out3 = jax.block_until_ready(encoder_forward(x, params_pad))
    assert out3.shape == (B, L)
    assert jnp.allclose(out3, ref, atol=1e-5, rtol=1e-5)

    # bf16 bandwidth-saving path (f32 accumulate, bf16 output): looser tol.
    params_bf16 = prepare_encoder_params(w1, b1, w2, b2, compute_dtype=jnp.bfloat16)
    out4 = jax.block_until_ready(encoder_forward(x, params_bf16))
    assert out4.shape == (B, L) and out4.dtype == jnp.bfloat16
    assert jnp.allclose(out4.astype(jnp.float32), ref, atol=5e-2, rtol=5e-2)

    print("KERNEL_OK")
</pallas_src>

<mosaic_0001>
module attributes {stable_mosaic.version = 11 : i64} {
  func.func @_encoder_kernel(%arg0: i32, %arg1: memref<8x16xf32, #tpu.memory_space<vmem>>, %arg2: memref<16x128xf32, #tpu.memory_space<vmem>>, %arg3: memref<1x128xf32, #tpu.memory_space<vmem>>, %arg4: memref<128x10xf32, #tpu.memory_space<vmem>>, %arg5: memref<1x10xf32, #tpu.memory_space<vmem>>, %arg6: memref<8x10xf32, #tpu.memory_space<vmem>>) attributes {dimension_semantics = [#tpu.dimension_semantics<parallel>], iteration_bounds = array<i64: 1>, scalar_prefetch = 0 : i64, scratch_operands = 0 : i64, tpu.core_type = #tpu.core_type<tc>, window_params = [{transform_indices = @transform_0, window_bounds = array<i64: 8, 16>}, {pipeline_mode = #tpu.pipeline_mode<synchronous>, transform_indices = @transform_1, window_bounds = array<i64: 16, 128>}, {pipeline_mode = #tpu.pipeline_mode<synchronous>, transform_indices = @transform_2, window_bounds = array<i64: 1, 128>}, {pipeline_mode = #tpu.pipeline_mode<synchronous>, transform_indices = @transform_3, window_bounds = array<i64: 128, 10>}, {pipeline_mode = #tpu.pipeline_mode<synchronous>, transform_indices = @transform_4, window_bounds = array<i64: 1, 10>}, {transform_indices = @transform_5, window_bounds = array<i64: 8, 10>}]} {
    %c0 = arith.constant 0 : index
    %c0_0 = arith.constant 0 : index
    %0 = vector.load %arg1[%c0, %c0_0] : memref<8x16xf32, #tpu.memory_space<vmem>>, vector<8x16xf32>
    %c0_1 = arith.constant 0 : index
    %c0_2 = arith.constant 0 : index
    %1 = vector.load %arg2[%c0_1, %c0_2] : memref<16x128xf32, #tpu.memory_space<vmem>>, vector<16x128xf32>
    %cst = arith.constant dense<0.000000e+00> : vector<8x128xf32>
    %2 = tpu.matmul %0, %1, %cst {dimension_numbers = #tpu.dot_dimension_numbers<[1], [0], [0], [1], [0, 0, 1, 1], [], []>} : vector<8x16xf32>, vector<16x128xf32>, vector<8x128xf32> -> vector<8x128xf32>
    %c0_3 = arith.constant 0 : index
    %c0_4 = arith.constant 0 : index
    %3 = vector.load %arg3[%c0_3, %c0_4] : memref<1x128xf32, #tpu.memory_space<vmem>>, vector<1x128xf32>
    %4 = vector.broadcast %3 : vector<1x128xf32> to vector<8x128xf32>
    %5 = arith.addf %2, %4 : vector<8x128xf32>
    %cst_5 = arith.constant 0.000000e+00 : f32
    %6 = vector.broadcast %cst_5 : f32 to vector<8x128xf32>
    %7 = arith.maximumf %5, %6 : vector<8x128xf32>
    %c0_6 = arith.constant 0 : index
    %c0_7 = arith.constant 0 : index
    %8 = vector.load %arg4[%c0_6, %c0_7] : memref<128x10xf32, #tpu.memory_space<vmem>>, vector<128x10xf32>
    %cst_8 = arith.constant dense<0.000000e+00> : vector<8x10xf32>
    %9 = tpu.matmul %7, %8, %cst_8 {dimension_numbers = #tpu.dot_dimension_numbers<[1], [0], [0], [1], [0, 0, 1, 1], [], []>} : vector<8x128xf32>, vector<128x10xf32>, vector<8x10xf32> -> vector<8x10xf32>
    %c0_9 = arith.constant 0 : index
    %c0_10 = arith.constant 0 : index
    %10 = vector.load %arg5[%c0_9, %c0_10] : memref<1x10xf32, #tpu.memory_space<vmem>>, vector<1x10xf32>
    %11 = vector.broadcast %10 : vector<1x10xf32> to vector<8x10xf32>
    %12 = arith.addf %9, %11 : vector<8x10xf32>
    %13 = math.tanh %12 : vector<8x10xf32>
    %c0_11 = arith.constant 0 : index
    %c0_12 = arith.constant 0 : index
    %14 = vector.load %arg6[%c0_11, %c0_12] : memref<8x10xf32, #tpu.memory_space<vmem>>, vector<8x10xf32>
    tpu.vector_store %arg6[%c0_11, %c0_12], %13 {strides = array<i32>} : memref<8x10xf32, #tpu.memory_space<vmem>>, vector<8x10xf32>,
    return
  }
  func.func @transform_0(%arg0: i32) -> (i32, i32) {
    %c0_i32 = arith.constant 0 : i32
    %c0_i32_0 = arith.constant 0 : i32
    return %arg0, %c0_i32 : i32, i32
  }
  func.func @transform_1(%arg0: i32) -> (i32, i32) {
    %c0_i32 = arith.constant 0 : i32
    %c0_i32_0 = arith.constant 0 : i32
    %c0_i32_1 = arith.constant 0 : i32
    return %c0_i32, %c0_i32_0 : i32, i32
  }
  func.func @transform_2(%arg0: i32) -> (i32, i32) {
    %c0_i32 = arith.constant 0 : i32
    %c0_i32_0 = arith.constant 0 : i32
    %c0_i32_1 = arith.constant 0 : i32
    return %c0_i32, %c0_i32_0 : i32, i32
  }
  func.func @transform_3(%arg0: i32) -> (i32, i32) {
    %c0_i32 = arith.constant 0 : i32
    %c0_i32_0 = arith.constant 0 : i32
    %c0_i32_1 = arith.constant 0 : i32
    return %c0_i32, %c0_i32_0 : i32, i32
  }
  func.func @transform_4(%arg0: i32) -> (i32, i32) {
    %c0_i32 = arith.constant 0 : i32
    %c0_i32_0 = arith.constant 0 : i32
    %c0_i32_1 = arith.constant 0 : i32
    return %c0_i32, %c0_i32_0 : i32, i32
  }
  func.func @transform_5(%arg0: i32) -> (i32, i32) {
    %c0_i32 = arith.constant 0 : i32
    %c0_i32_0 = arith.constant 0 : i32
    return %arg0, %c0_i32 : i32, i32
  }
}

module attributes {stable_mosaic.version = 11 : i64} {
  func.func @_encoder_kernel(%arg0: i32, %arg1: memref<8x16xf32, #tpu.memory_space<vmem>>, %arg2: memref<16x128xf32, #tpu.memory_space<vmem>>, %arg3: memref<1x128xf32, #tpu.memory_space<vmem>>, %arg4: memref<128x10xf32, #tpu.memory_space<vmem>>, %arg5: memref<1x10xf32, #tpu.memory_space<vmem>>, %arg6: memref<8x10xf32, #tpu.memory_space<vmem>>) attributes {dimension_semantics = [#tpu.dimension_semantics<parallel>], iteration_bounds = array<i64: 1>, scalar_prefetch = 0 : i64, scratch_operands = 0 : i64, tpu.core_type = #tpu.core_type<tc>, window_params = [{transform_indices = @transform_0, window_bounds = array<i64: 8, 16>}, {pipeline_mode = #tpu.pipeline_mode<synchronous>, transform_indices = @transform_1, window_bounds = array<i64: 16, 128>}, {pipeline_mode = #tpu.pipeline_mode<synchronous>, transform_indices = @transform_2, window_bounds = array<i64: 1, 128>}, {pipeline_mode = #tpu.pipeline_mode<synchronous>, transform_indices = @transform_3, window_bounds = array<i64: 128, 10>}, {pipeline_mode = #tpu.pipeline_mode<synchronous>, transform_indices = @transform_4, window_bounds = array<i64: 1, 10>}, {transform_indices = @transform_5, window_bounds = array<i64: 8, 10>}]} {
    %c0 = arith.constant 0 : index
    %c0_0 = arith.constant 0 : index
    %0 = vector.load %arg1[%c0, %c0_0] : memref<8x16xf32, #tpu.memory_space<vmem>>, vector<8x16xf32>
    %c0_1 = arith.constant 0 : index
    %c0_2 = arith.constant 0 : index
    %1 = vector.load %arg2[%c0_1, %c0_2] : memref<16x128xf32, #tpu.memory_space<vmem>>, vector<16x128xf32>
    %cst = arith.constant dense<0.000000e+00> : vector<8x128xf32>
    %2 = tpu.matmul %0, %1, %cst {dimension_numbers = #tpu.dot_dimension_numbers<[1], [0], [0], [1], [0, 0, 1, 1], [], []>} : vector<8x16xf32>, vector<16x128xf32>, vector<8x128xf32> -> vector<8x128xf32>
    %c0_3 = arith.constant 0 : index
    %c0_4 = arith.constant 0 : index
    %3 = vector.load %arg3[%c0_3, %c0_4] : memref<1x128xf32, #tpu.memory_space<vmem>>, vector<1x128xf32>
    %4 = vector.broadcast %3 : vector<1x128xf32> to vector<8x128xf32>
    %5 = arith.addf %2, %4 : vector<8x128xf32>
    %cst_5 = arith.constant 0.000000e+00 : f32
    %6 = vector.broadcast %cst_5 : f32 to vector<8x128xf32>
    %7 = arith.maximumf %5, %6 : vector<8x128xf32>
    %c0_6 = arith.constant 0 : index
    %c0_7 = arith.constant 0 : index
    %8 = vector.load %arg4[%c0_6, %c0_7] : memref<128x10xf32, #tpu.memory_space<vmem>>, vector<128x10xf32>
    %cst_8 = arith.constant dense<0.000000e+00> : vector<8x10xf32>
    %9 = tpu.matmul %7, %8, %cst_8 {dimension_numbers = #tpu.dot_dimension_numbers<[1], [0], [0], [1], [0, 0, 1, 1], [], []>} : vector<8x128xf32>, vector<128x10xf32>, vector<8x10xf32> -> vector<8x10xf32>
    %c0_9 = arith.constant 0 : index
    %c0_10 = arith.constant 0 : index
    %10 = vector.load %arg5[%c0_9, %c0_10] : memref<1x10xf32, #tpu.memory_space<vmem>>, vector<1x10xf32>
    %11 = vector.broadcast %10 : vector<1x10xf32> to vector<8x10xf32>
    %12 = arith.addf %9, %11 : vector<8x10xf32>
    %13 = math.tanh %12 : vector<8x10xf32>
    %c0_11 = arith.constant 0 : index
    %c0_12 = arith.constant 0 : index
    %14 = vector.load %arg6[%c0_11, %c0_12] : memref<8x10xf32, #tpu.memory_space<vmem>>, vector<8x10xf32>
    tpu.vector_store %arg6[%c0_11, %c0_12], %13 {strides = array<i32>} : memref<8x10xf32, #tpu.memory_space<vmem>>, vector<8x10xf32>,
    return
  }
  func.func @transform_0(%arg0: i32) -> (i32, i32) {
    %c0_i32 = arith.constant 0 : i32
    %c0_i32_0 = arith.constant 0 : i32
    return %arg0, %c0_i32 : i32, i32
  }
  func.func @transform_1(%arg0: i32) -> (i32, i32) {
    %c0_i32 = arith.constant 0 : i32
    %c0_i32_0 = arith.constant 0 : i32
    %c0_i32_1 = arith.constant 0 : i32
    return %c0_i32, %c0_i32_0 : i32, i32
  }
  func.func @transform_2(%arg0: i32) -> (i32, i32) {
    %c0_i32 = arith.constant 0 : i32
    %c0_i32_0 = arith.constant 0 : i32
    %c0_i32_1 = arith.constant 0 : i32
    return %c0_i32, %c0_i32_0 : i32, i32
  }
  func.func @transform_3(%arg0: i32) -> (i32, i32) {
    %c0_i32 = arith.constant 0 : i32
    %c0_i32_0 = arith.constant 0 : i32
    %c0_i32_1 = arith.constant 0 : i32
    return %c0_i32, %c0_i32_0 : i32, i32
  }
  func.func @transform_4(%arg0: i32) -> (i32, i32) {
    %c0_i32 = arith.constant 0 : i32
    %c0_i32_0 = arith.constant 0 : i32
    %c0_i32_1 = arith.constant 0 : i32
    return %c0_i32, %c0_i32_0 : i32, i32
  }
  func.func @transform_5(%arg0: i32) -> (i32, i32) {
    %c0_i32 = arith.constant 0 : i32
    %c0_i32_0 = arith.constant 0 : i32
    return %arg0, %c0_i32 : i32, i32
  }
}

</mosaic_0001>

<llo_original>
// kernel: tpu_custom_call.1
$region0: #{tpu_custom_call.1}
  #allocation0 [shape = 'u32[]', space=smem, size = 0x4, offset = 0x4, fixed_abs, tag = 'smem constant byte address 0x4 - core index']
  #allocation1 [shape = 'u32[72,128]{1,0:T(1,128)}', space=vmem, size = 0x9000, scoped, tag = 'internal scratch']
  %s0 = inlined_call_operand.vmem [shape: f32[8,16], index: 0, kind: input, shape index: {}]
  %s1 = inlined_call_operand.vmem [shape: f32[16,128], index: 1, kind: input, shape index: {}]
  %s2 = inlined_call_operand.vmem [shape: f32[1,128], index: 2, kind: input, shape index: {}]
  %s3 = inlined_call_operand.vmem [shape: f32[128,10], index: 3, kind: input, shape index: {}]
  %s4 = inlined_call_operand.vmem [shape: f32[1,10], index: 4, kind: input, shape index: {}]
  %s5 = inlined_call_operand.hbm [shape: f32[8,10], index: 5, kind: output, shape index: {}]
  %s6 = sld [smem:[#allocation0]]
  $region30: #{tpu_custom_call.1} parent=0
    _
  %s8 = ssub.s32 1, %s6
  %s9 = scalar_select 0, %s8, %s6
  $region1: #{tpu_custom_call.1} parent=0
    #allocation2 [shape = 'u8[4096]{0}', space=vmem, size = 0x1000, scoped, tag = 'output window, operand 0, single buffered']
    #allocation3 [shape = 's32[1]{0}', space=sflag, size = 0x4, scoped, tag = 'scoped memory for tpu_custom_call.1']
    %10 = vsyncpa [#allocation3], 0
    // Predicated region
    $region2: #{tpu_custom_call.1} parent=1 // pred_check
      _
    $region3: #{tpu_custom_call.1} parent=1 // pred_check_branch
      %12 = sbr.rel (0) target = $region5
    $region4: #{tpu_custom_call.1} parent=1 // pred_region
      _
    $region5: #{tpu_custom_call.1} parent=1 // pred_fallthru
      _
    // Predicated region
    $region6: #{tpu_custom_call.1} parent=1 // pred_check
      _
    $region7: #{tpu_custom_call.1} parent=1 // pred_check_branch
      %14 = sbr.rel (0) target = $region9
    $region8: #{tpu_custom_call.1} parent=1 // pred_region
      _
    $region9: #{tpu_custom_call.1} parent=1 // pred_fallthru
      _
    // Predicated region
    $region10: #{tpu_custom_call.1} parent=1 // pred_check
      _
    $region11: #{tpu_custom_call.1} parent=1 // pred_check_branch
      %16 = sbr.rel (0) target = $region13
    $region12: #{tpu_custom_call.1} parent=1 // pred_region
      _
    $region13: #{tpu_custom_call.1} parent=1 // pred_fallthru
      _
    // Predicated region
    $region14: #{tpu_custom_call.1} parent=1 // pred_check
      _
    $region15: #{tpu_custom_call.1} parent=1 // pred_check_branch
      %18 = sbr.rel (0) target = $region17
    $region16: #{tpu_custom_call.1} parent=1 // pred_region
      _
    $region17: #{tpu_custom_call.1} parent=1 // pred_fallthru
      _
    // Predicated region
    $region18: #{tpu_custom_call.1} parent=1 // pred_check
      _
    $region19: #{tpu_custom_call.1} parent=1 // pred_check_branch
      %20 = sbr.rel (0) target = $region21
    $region20: #{tpu_custom_call.1} parent=1 // pred_region
      _
    $region21: #{tpu_custom_call.1} parent=1 // pred_fallthru
      _
    %v21 = vld [vmem:[%s0] sm:$0xff]
    %v22 = vld [vmem:[%s1] sm:$0xff]
    %v23 = vld [vmem:[%s1 + $0x8] sm:$0xff]
    %v24 = vld [vmem:[%s2] sm:$0x1]
    %v26 = vperm.slane %v24, 0
    %vm28 = vcmask 130048
    %v30 = vsel %vm28, %v21, 0
    %32 = vmatpush.msra.mxu0 0.0
    %33 = vmatpush.msra.mxu0 0.0
    %34 = vmatpush.msra.mxu0 0.0
    %35 = vmatpush.msra.mxu0 0.0
    %36 = vmatpush.msra.mxu0 0.0
    %37 = vmatpush.msra.mxu0 0.0
    %38 = vmatpush.msra.mxu0 0.0
    %39 = vmatpush.msra.mxu0 0.0
    %40 = vmatpush.msra.mxu0 0.0
    %41 = vmatpush.msra.mxu0 0.0
    %42 = vmatpush.msra.mxu0 0.0
    %43 = vmatpush.msra.mxu0 0.0
    %44 = vmatpush.msra.mxu0 0.0
    %45 = vmatpush.msra.mxu0 0.0
    %46 = vmatpush.msra.mxu0 %v23
    %47 = vmatpush.msra.mxu0 %v22
    %48 = vmatmul.f32.gmra.mxu0 %v30
    %v49 = vpop.f32.mrf.mxu0
    %v50 = vadd.f32 %v26, %v49
    %51 = vdwg.mxu0
    %v52 = vmax.f32 %v50, 0.0
    %v53 = vld [vmem:[%s3] sm:$0xff]
    %v54 = vld [vmem:[%s3 + $0x8] sm:$0xff]
    %v55 = vld [vmem:[%s3 + $0x10] sm:$0xff]
    %v56 = vld [vmem:[%s3 + $0x18] sm:$0xff]
    %v57 = vld [vmem:[%s3 + $0x20] sm:$0xff]
    %v58 = vld [vmem:[%s3 + $0x28] sm:$0xff]
    %v59 = vld [vmem:[%s3 + $0x30] sm:$0xff]
    %v60 = vld [vmem:[%s3 + $0x38] sm:$0xff]
    %v61 = vld [vmem:[%s3 + $0x40] sm:$0xff]
    %v62 = vld [vmem:[%s3 + $0x48] sm:$0xff]
    %v63 = vld [vmem:[%s3 + $0x50] sm:$0xff]
    %v64 = vld [vmem:[%s3 + $0x58] sm:$0xff]
    %v65 = vld [vmem:[%s3 + $0x60] sm:$0xff]
    %v66 = vld [vmem:[%s3 + $0x68] sm:$0xff]
    %v67 = vld [vmem:[%s3 + $0x70] sm:$0xff]
    %v68 = vld [vmem:[%s3 + $0x78] sm:$0xff]
    %v69 = vld [vmem:[%s4] sm:$0x1]
    %v71 = vperm.slane %v69, 0
    %73 = vmatpush.msra.mxu0 %v68
    %74 = vmatpush.msra.mxu0 %v67
    %75 = vmatpush.msra.mxu0 %v66
    %76 = vmatpush.msra.mxu0 %v65
    %77 = vmatpush.msra.mxu0 %v64
    %78 = vmatpush.msra.mxu0 %v63
    %79 = vmatpush.msra.mxu0 %v62
    %80 = vmatpush.msra.mxu0 %v61
    %81 = vmatpush.msra.mxu0 %v60
    %82 = vmatpush.msra.mxu0 %v59
    %83 = vmatpush.msra.mxu0 %v58
    %84 = vmatpush.msra.mxu0 %v57
    %85 = vmatpush.msra.mxu0 %v56
    %86 = vmatpush.msra.mxu0 %v55
    %87 = vmatpush.msra.mxu0 %v54
    %88 = vmatpush.msra.mxu0 %v53
    %89 = vmatmul.f32.gmra.mxu0 %v52
    %v90 = vpop.f32.mrf.mxu0
    %v91 = vadd.f32 %v71, %v90
    %92 = vdwg.mxu0
    %v93 = vtanh.pop %v91
    %vm94 = vcmask 80896
    %95 = vst.msk [vmem:[#allocation2] sm:$0xff] %vm94, %v93
    // Predicated region
    $region22: #{tpu_custom_call.1} parent=1 // pred_check
      _
    $region23: #{tpu_custom_call.1} parent=1 // pred_check_branch
      %97 = sbr.rel (0) target = $region25
    $region24: #{tpu_custom_call.1} parent=1 // pred_region
      %99 = vsyncadd [#allocation3], 0
      %s101 = sshll.u32 [#allocation2], 4
      %s102 = int_to_ptr.vmem [resolvable:$true] %s101
      %s103 = sshll.u32 %s5, 4
      %s104 = int_to_ptr.hbm [resolvable:$true] %s103
      %106 = dma.vmem_to_hbm [thread:$0]  %s102, 128, %s104, [#allocation3]
    $region25: #{tpu_custom_call.1} parent=1 // pred_fallthru
      _
    // Predicated region
    $region26: #{tpu_custom_call.1} parent=1 // pred_check
      _
    $region27: #{tpu_custom_call.1} parent=1 // pred_check_branch
      %108 = sbr.rel (0) target = $region29
    $region28: #{tpu_custom_call.1} parent=1 // pred_region
      %110 = dma.done [#allocation3], 128
    $region29: #{tpu_custom_call.1} parent=1 // pred_fallthru
      _
    %111 = vsyncpa [#allocation3], 1

// kernel: tpu_custom_call.1
$region0: #{tpu_custom_call.1}
  #allocation0 [shape = 'u32[]', space=smem, size = 0x4, offset = 0x4, fixed_abs, tag = 'smem constant byte address 0x4 - core index']
  #allocation1 [shape = 'u32[72,128]{1,0:T(1,128)}', space=vmem, size = 0x9000, scoped, tag = 'internal scratch']
  %s0 = inlined_call_operand.vmem [shape: f32[8,16], index: 0, kind: input, shape index: {}]
  %s1 = inlined_call_operand.vmem [shape: f32[16,128], index: 1, kind: input, shape index: {}]
  %s2 = inlined_call_operand.vmem [shape: f32[1,128], index: 2, kind: input, shape index: {}]
  %s3 = inlined_call_operand.vmem [shape: f32[128,10], index: 3, kind: input, shape index: {}]
  %s4 = inlined_call_operand.vmem [shape: f32[1,10], index: 4, kind: input, shape index: {}]
  %s5 = inlined_call_operand.hbm [shape: f32[8,10], index: 5, kind: output, shape index: {}]
  %s6 = sld [smem:[#allocation0]]
  $region30: #{tpu_custom_call.1} parent=0
    _
  %s8 = ssub.s32 1, %s6
  %s9 = scalar_select 0, %s8, %s6
  $region1: #{tpu_custom_call.1} parent=0
    #allocation2 [shape = 'u8[4096]{0}', space=vmem, size = 0x1000, scoped, tag = 'output window, operand 0, single buffered']
    #allocation3 [shape = 's32[1]{0}', space=sflag, size = 0x4, scoped, tag = 'scoped memory for tpu_custom_call.1']
    %10 = vsyncpa [#allocation3], 0
    // Predicated region
    $region2: #{tpu_custom_call.1} parent=1 // pred_check
      _
    $region3: #{tpu_custom_call.1} parent=1 // pred_check_branch
      %12 = sbr.rel (0) target = $region5
    $region4: #{tpu_custom_call.1} parent=1 // pred_region
      _
    $region5: #{tpu_custom_call.1} parent=1 // pred_fallthru
      _
    // Predicated region
    $region6: #{tpu_custom_call.1} parent=1 // pred_check
      _
    $region7: #{tpu_custom_call.1} parent=1 // pred_check_branch
      %14 = sbr.rel (0) target = $region9
    $region8: #{tpu_custom_call.1} parent=1 // pred_region
      _
    $region9: #{tpu_custom_call.1} parent=1 // pred_fallthru
      _
    // Predicated region
    $region10: #{tpu_custom_call.1} parent=1 // pred_check
      _
    $region11: #{tpu_custom_call.1} parent=1 // pred_check_branch
      %16 = sbr.rel (0) target = $region13
    $region12: #{tpu_custom_call.1} parent=1 // pred_region
      _
    $region13: #{tpu_custom_call.1} parent=1 // pred_fallthru
      _
    // Predicated region
    $region14: #{tpu_custom_call.1} parent=1 // pred_check
      _
    $region15: #{tpu_custom_call.1} parent=1 // pred_check_branch
      %18 = sbr.rel (0) target = $region17
    $region16: #{tpu_custom_call.1} parent=1 // pred_region
      _
    $region17: #{tpu_custom_call.1} parent=1 // pred_fallthru
      _
    // Predicated region
    $region18: #{tpu_custom_call.1} parent=1 // pred_check
      _
    $region19: #{tpu_custom_call.1} parent=1 // pred_check_branch
      %20 = sbr.rel (0) target = $region21
    $region20: #{tpu_custom_call.1} parent=1 // pred_region
      _
    $region21: #{tpu_custom_call.1} parent=1 // pred_fallthru
      _
    %v21 = vld [vmem:[%s0] sm:$0xff]
    %v22 = vld [vmem:[%s1] sm:$0xff]
    %v23 = vld [vmem:[%s1 + $0x8] sm:$0xff]
    %v24 = vld [vmem:[%s2] sm:$0x1]
    %v26 = vperm.slane %v24, 0
    %vm28 = vcmask 130048
    %v30 = vsel %vm28, %v21, 0
    %32 = vmatpush.msra.mxu0 0.0
    %33 = vmatpush.msra.mxu0 0.0
    %34 = vmatpush.msra.mxu0 0.0
    %35 = vmatpush.msra.mxu0 0.0
    %36 = vmatpush.msra.mxu0 0.0
    %37 = vmatpush.msra.mxu0 0.0
    %38 = vmatpush.msra.mxu0 0.0
    %39 = vmatpush.msra.mxu0 0.0
    %40 = vmatpush.msra.mxu0 0.0
    %41 = vmatpush.msra.mxu0 0.0
    %42 = vmatpush.msra.mxu0 0.0
    %43 = vmatpush.msra.mxu0 0.0
    %44 = vmatpush.msra.mxu0 0.0
    %45 = vmatpush.msra.mxu0 0.0
    %46 = vmatpush.msra.mxu0 %v23
    %47 = vmatpush.msra.mxu0 %v22
    %48 = vmatmul.f32.gmra.mxu0 %v30
    %v49 = vpop.f32.mrf.mxu0
    %v50 = vadd.f32 %v26, %v49
    %51 = vdwg.mxu0
    %v52 = vmax.f32 %v50, 0.0
    %v53 = vld [vmem:[%s3] sm:$0xff]
    %v54 = vld [vmem:[%s3 + $0x8] sm:$0xff]
    %v55 = vld [vmem:[%s3 + $0x10] sm:$0xff]
    %v56 = vld [vmem:[%s3 + $0x18] sm:$0xff]
    %v57 = vld [vmem:[%s3 + $0x20] sm:$0xff]
    %v58 = vld [vmem:[%s3 + $0x28] sm:$0xff]
    %v59 = vld [vmem:[%s3 + $0x30] sm:$0xff]
    %v60 = vld [vmem:[%s3 + $0x38] sm:$0xff]
    %v61 = vld [vmem:[%s3 + $0x40] sm:$0xff]
    %v62 = vld [vmem:[%s3 + $0x48] sm:$0xff]
    %v63 = vld [vmem:[%s3 + $0x50] sm:$0xff]
    %v64 = vld [vmem:[%s3 + $0x58] sm:$0xff]
    %v65 = vld [vmem:[%s3 + $0x60] sm:$0xff]
    %v66 = vld [vmem:[%s3 + $0x68] sm:$0xff]
    %v67 = vld [vmem:[%s3 + $0x70] sm:$0xff]
    %v68 = vld [vmem:[%s3 + $0x78] sm:$0xff]
    %v69 = vld [vmem:[%s4] sm:$0x1]
    %v71 = vperm.slane %v69, 0
    %73 = vmatpush.msra.mxu0 %v68
    %74 = vmatpush.msra.mxu0 %v67
    %75 = vmatpush.msra.mxu0 %v66
    %76 = vmatpush.msra.mxu0 %v65
    %77 = vmatpush.msra.mxu0 %v64
    %78 = vmatpush.msra.mxu0 %v63
    %79 = vmatpush.msra.mxu0 %v62
    %80 = vmatpush.msra.mxu0 %v61
    %81 = vmatpush.msra.mxu0 %v60
    %82 = vmatpush.msra.mxu0 %v59
    %83 = vmatpush.msra.mxu0 %v58
    %84 = vmatpush.msra.mxu0 %v57
    %85 = vmatpush.msra.mxu0 %v56
    %86 = vmatpush.msra.mxu0 %v55
    %87 = vmatpush.msra.mxu0 %v54
    %88 = vmatpush.msra.mxu0 %v53
    %89 = vmatmul.f32.gmra.mxu0 %v52
    %v90 = vpop.f32.mrf.mxu0
    %v91 = vadd.f32 %v71, %v90
    %92 = vdwg.mxu0
    %v93 = vtanh.pop %v91
    %vm94 = vcmask 80896
    %95 = vst.msk [vmem:[#allocation2] sm:$0xff] %vm94, %v93
    // Predicated region
    $region22: #{tpu_custom_call.1} parent=1 // pred_check
      _
    $region23: #{tpu_custom_call.1} parent=1 // pred_check_branch
      %97 = sbr.rel (0) target = $region25
    $region24: #{tpu_custom_call.1} parent=1 // pred_region
      %99 = vsyncadd [#allocation3], 0
      %s101 = sshll.u32 [#allocation2], 4
      %s102 = int_to_ptr.vmem [resolvable:$true] %s101
      %s103 = sshll.u32 %s5, 4
      %s104 = int_to_ptr.hbm [resolvable:$true] %s103
      %106 = dma.vmem_to_hbm [thread:$0]  %s102, 128, %s104, [#allocation3]
    $region25: #{tpu_custom_call.1} parent=1 // pred_fallthru
      _
    // Predicated region
    $region26: #{tpu_custom_call.1} parent=1 // pred_check
      _
    $region27: #{tpu_custom_call.1} parent=1 // pred_check_branch
      %108 = sbr.rel (0) target = $region29
    $region28: #{tpu_custom_call.1} parent=1 // pred_region
      %110 = dma.done [#allocation3], 128
    $region29: #{tpu_custom_call.1} parent=1 // pred_fallthru
      _
    %111 = vsyncpa [#allocation3], 1

</llo_original>
